<compile_context>
chip_gen: v7x
topology: tpu7x:2x2x1
jax: 0.10.0
libtpu: 0.0.40
codegen_flags: <defaults>
</compile_context>

<pallas_src>
import math

import jax
import jax.numpy as jnp
from jax.experimental import pallas as pl
from jax.experimental.pallas import tpu as pltpu


def _round_up(n, m):
    return ((n + m - 1) // m) * m


def _posemb_kernel(x_ref, w_ref, x_out_ref, sin_ref, cos_ref):
    # x_ref:   (TB, 1)        f32
    # w_ref:   (1, half_dim)  f32   (same block every grid step -> stays resident)
    # outputs: (TB, 1), (TB, half_dim), (TB, half_dim)
    x = x_ref[...]                                   # (TB, 1)
    w = w_ref[...]                                   # (1, half_dim)
    freqs = x * (w * (2.0 * math.pi))                # VPU broadcast outer product
    x_out_ref[...] = x.astype(x_out_ref.dtype)
    sin_ref[...] = jnp.sin(freqs).astype(sin_ref.dtype)
    cos_ref[...] = jnp.cos(freqs).astype(cos_ref.dtype)


def random_or_learned_sinusoidal_pos_emb(x, weights, *, block_b=1024,
                                         out_dtype=jnp.float32):
    """x: (B,) float array, weights: (half_dim,) float array -> (B, 1 + 2*half_dim).

    Output layout matches PyTorch: [x | sin(freqs) | cos(freqs)] along the last dim.
    """
    B = int(x.shape[0])
    half_dim = int(weights.shape[0])

    # B-tile: multiple of 8 (f32 sublane), capped by block_b; sized so that
    # double-buffered (TB,1)+(TB,half_dim)*2 f32 blocks stay well inside the
    # scoped VMEM budget even on v7x (64 MiB physical / 32 MiB default scoped).
    tb = min(_round_up(max(block_b, 8), 8), _round_up(B, 8))
    Bp = _round_up(B, tb)          # pad B so every grid step is a full block

    x2 = x.astype(jnp.float32).reshape(B, 1)
    if Bp != B:
        x2 = jnp.pad(x2, ((0, Bp - B), (0, 0)))
    w2 = weights.astype(jnp.float32).reshape(1, half_dim)

    grid = (Bp // tb,)

    x_out, sin_out, cos_out = pl.pallas_call(
        _posemb_kernel,
        out_shape=(
            jax.ShapeDtypeStruct((Bp, 1), out_dtype),
            jax.ShapeDtypeStruct((Bp, half_dim), out_dtype),
            jax.ShapeDtypeStruct((Bp, half_dim), out_dtype),
        ),
        grid=grid,
        in_specs=[
            pl.BlockSpec((tb, 1), lambda i: (i, 0)),
            pl.BlockSpec((1, half_dim), lambda i: (0, 0)),   # resident weights
        ],
        out_specs=(
            pl.BlockSpec((tb, 1), lambda i: (i, 0)),
            pl.BlockSpec((tb, half_dim), lambda i: (i, 0)),
            pl.BlockSpec((tb, half_dim), lambda i: (i, 0)),
        ),
        compiler_params=pltpu.CompilerParams(
            dimension_semantics=("parallel",),                # 2x on v7x dual-TC
        ),
    )(x2, w2)

    # Final assembly (and un-padding) outside the kernel: plain XLA concat on
    # already lane-dense slabs. For toy sizes this whole module is launch-bound;
    # fusing it into the downstream time-embedding MLP is the only bigger win.
    # TODO(synk): fuse into the consuming time-MLP kernel when used at toy B.
    return jnp.concatenate(
        [x_out[:B], sin_out[:B], cos_out[:B]], axis=-1
    )


def _reference(x, weights):
    freqs = x[:, None] * weights[None, :] * 2.0 * math.pi
    return jnp.concatenate([x[:, None], jnp.sin(freqs), jnp.cos(freqs)], axis=-1)


if __name__ == "__main__":
    key = jax.random.PRNGKey(0)
    k_w, k_x, k_x2 = jax.random.split(key, 3)

    # Small shapes consistent with the module: dim must be even.
    B = 8
    dim = 16
    half_dim = dim // 2

    weights = jax.random.normal(k_w, (half_dim,), dtype=jnp.float32)
    x = jax.random.uniform(k_x, (B,), dtype=jnp.float32) * 10.0

    out = random_or_learned_sinusoidal_pos_emb(x, weights)
    out = jax.block_until_ready(out)

    ref = _reference(x, weights)
    assert out.shape == (B, 1 + dim), out.shape
    assert jnp.allclose(out, ref, atol=1e-5, rtol=1e-5)

    # Exercise the padded / tiled path (B not a multiple of the 8-row sublane).
    B2 = 37
    x_b = jax.random.uniform(k_x2, (B2,), dtype=jnp.float32) * 10.0
    out_b = jax.block_until_ready(
        random_or_learned_sinusoidal_pos_emb(x_b, weights, block_b=16)
    )
    ref_b = _reference(x_b, weights)
    assert out_b.shape == (B2, 1 + dim), out_b.shape
    assert jnp.allclose(out_b, ref_b, atol=1e-5, rtol=1e-5)

    print("KERNEL_OK")
</pallas_src>

<mosaic_0001>
module attributes {stable_mosaic.version = 11 : i64} {
  func.func @_posemb_kernel(%arg0: i32, %arg1: memref<8x1xf32, #tpu.memory_space<vmem>>, %arg2: memref<1x8xf32, #tpu.memory_space<vmem>>, %arg3: memref<8x1xf32, #tpu.memory_space<vmem>>, %arg4: memref<8x8xf32, #tpu.memory_space<vmem>>, %arg5: memref<8x8xf32, #tpu.memory_space<vmem>>) attributes {dimension_semantics = [#tpu.dimension_semantics<parallel>], iteration_bounds = array<i64: 1>, scalar_prefetch = 0 : i64, scratch_operands = 0 : i64, tpu.core_type = #tpu.core_type<tc>, window_params = [{transform_indices = @transform_0, window_bounds = array<i64: 8, 1>}, {pipeline_mode = #tpu.pipeline_mode<synchronous>, transform_indices = @transform_1, window_bounds = array<i64: 1, 8>}, {transform_indices = @transform_2, window_bounds = array<i64: 8, 1>}, {transform_indices = @transform_3, window_bounds = array<i64: 8, 8>}, {transform_indices = @transform_4, window_bounds = array<i64: 8, 8>}]} {
    %c0 = arith.constant 0 : index
    %c0_0 = arith.constant 0 : index
    %0 = vector.load %arg1[%c0, %c0_0] : memref<8x1xf32, #tpu.memory_space<vmem>>, vector<8x1xf32>
    %c0_1 = arith.constant 0 : index
    %c0_2 = arith.constant 0 : index
    %1 = vector.load %arg2[%c0_1, %c0_2] : memref<1x8xf32, #tpu.memory_space<vmem>>, vector<1x8xf32>
    %cst = arith.constant 6.28318548 : f32
    %2 = vector.broadcast %cst : f32 to vector<1x8xf32>
    %3 = arith.mulf %1, %2 : vector<1x8xf32>
    %4 = vector.broadcast %0 : vector<8x1xf32> to vector<8x8xf32>
    %5 = vector.broadcast %3 : vector<1x8xf32> to vector<8x8xf32>
    %6 = arith.mulf %4, %5 : vector<8x8xf32>
    %c0_3 = arith.constant 0 : index
    %c0_4 = arith.constant 0 : index
    %7 = vector.load %arg3[%c0_3, %c0_4] : memref<8x1xf32, #tpu.memory_space<vmem>>, vector<8x1xf32>
    tpu.vector_store %arg3[%c0_3, %c0_4], %0 {strides = array<i32>} : memref<8x1xf32, #tpu.memory_space<vmem>>, vector<8x1xf32>,
    %8 = math.sin %6 : vector<8x8xf32>
    %c0_5 = arith.constant 0 : index
    %c0_6 = arith.constant 0 : index
    %9 = vector.load %arg4[%c0_5, %c0_6] : memref<8x8xf32, #tpu.memory_space<vmem>>, vector<8x8xf32>
    tpu.vector_store %arg4[%c0_5, %c0_6], %8 {strides = array<i32>} : memref<8x8xf32, #tpu.memory_space<vmem>>, vector<8x8xf32>,
    %10 = math.cos %6 : vector<8x8xf32>
    %c0_7 = arith.constant 0 : index
    %c0_8 = arith.constant 0 : index
    %11 = vector.load %arg5[%c0_7, %c0_8] : memref<8x8xf32, #tpu.memory_space<vmem>>, vector<8x8xf32>
    tpu.vector_store %arg5[%c0_7, %c0_8], %10 {strides = array<i32>} : memref<8x8xf32, #tpu.memory_space<vmem>>, vector<8x8xf32>,
    return
  }
  func.func @transform_0(%arg0: i32) -> (i32, i32) {
    %c0_i32 = arith.constant 0 : i32
    %c0_i32_0 = arith.constant 0 : i32
    return %arg0, %c0_i32 : i32, i32
  }
  func.func @transform_1(%arg0: i32) -> (i32, i32) {
    %c0_i32 = arith.constant 0 : i32
    %c0_i32_0 = arith.constant 0 : i32
    %c0_i32_1 = arith.constant 0 : i32
    return %c0_i32, %c0_i32_0 : i32, i32
  }
  func.func @transform_2(%arg0: i32) -> (i32, i32) {
    %c0_i32 = arith.constant 0 : i32
    %c0_i32_0 = arith.constant 0 : i32
    return %arg0, %c0_i32 : i32, i32
  }
  func.func @transform_3(%arg0: i32) -> (i32, i32) {
    %c0_i32 = arith.constant 0 : i32
    %c0_i32_0 = arith.constant 0 : i32
    return %arg0, %c0_i32 : i32, i32
  }
  func.func @transform_4(%arg0: i32) -> (i32, i32) {
    %c0_i32 = arith.constant 0 : i32
    %c0_i32_0 = arith.constant 0 : i32
    return %arg0, %c0_i32 : i32, i32
  }
}

</mosaic_0001>

<llo_original>
// kernel: tpu_custom_call.1
$region0: #{tpu_custom_call.1}
  #allocation0 [shape = 'u32[]', space=smem, size = 0x4, offset = 0x4, fixed_abs, tag = 'smem constant byte address 0x4 - core index']
  #allocation1 [shape = 'u32[144,128]{1,0:T(1,128)}', space=vmem, size = 0x12000, scoped, tag = 'internal scratch']
  %s0 = inlined_call_operand.vmem [shape: f32[8,1], index: 0, kind: input, shape index: {}]
  %s1 = inlined_call_operand.vmem [shape: f32[1,8], index: 1, kind: input, shape index: {}]
  %s2 = inlined_call_operand.vmem [shape: f32[8,1], index: 2, kind: output, shape index: {0}]
  %s3 = inlined_call_operand.hbm [shape: f32[8,8], index: 3, kind: output, shape index: {1}]
  %s4 = inlined_call_operand.hbm [shape: f32[8,8], index: 4, kind: output, shape index: {2}]
  %5 = xla_tuple %s2, %s3, %s4
  %s6 = sld [smem:[#allocation0]]
  $region34: #{tpu_custom_call.1} parent=0
    _
  %s8 = ssub.s32 1, %s6
  %s9 = scalar_select 0, %s8, %s6
  $region1: #{tpu_custom_call.1} parent=0
    #allocation2 [shape = 'u8[4096]{0}', space=vmem, size = 0x1000, scoped, tag = 'output window, operand 1, single buffered']
    #allocation3 [shape = 's32[1]{0}', space=sflag, size = 0x4, scoped, tag = 'scoped memory for tpu_custom_call.1']
    #allocation4 [shape = 'u8[4096]{0}', space=vmem, size = 0x1000, scoped, tag = 'output window, operand 2, single buffered']
    #allocation5 [shape = 's32[1]{0}', space=sflag, size = 0x4, scoped, tag = 'scoped memory for tpu_custom_call.1']
    %10 = vsyncpa [#allocation3], 0
    %11 = vsyncpa [#allocation5], 0
    // Predicated region
    $region2: #{tpu_custom_call.1} parent=1 // pred_check
      _
    $region3: #{tpu_custom_call.1} parent=1 // pred_check_branch
      %13 = sbr.rel (0) target = $region5
    $region4: #{tpu_custom_call.1} parent=1 // pred_region
      _
    $region5: #{tpu_custom_call.1} parent=1 // pred_fallthru
      _
    // Predicated region
    $region6: #{tpu_custom_call.1} parent=1 // pred_check
      _
    $region7: #{tpu_custom_call.1} parent=1 // pred_check_branch
      %15 = sbr.rel (0) target = $region9
    $region8: #{tpu_custom_call.1} parent=1 // pred_region
      _
    $region9: #{tpu_custom_call.1} parent=1 // pred_fallthru
      _
    %v16 = vld [vmem:[%s0] sm:$0xff]
    %v17 = vld [vmem:[%s1] sm:$0x1]
    %v18 = vmul.f32 %v17, 6.2831855
    %20 = vset.pattern.permute.xlu0 0
    %21 = vperm.xlu0 %20, %v16
    %v22 = vpop.permute.xlu0 %21
    %v25 = vlaneseq
    %v26 = vshrl.u32 %v25, 7
    %v27 = vsub.s32 0, %v26
    %v28 = vrot.slane %v18, %v27
    %v30 = vmul.f32 %v22, %v28
    %vm31 = vcmask 7168
    %32 = vst.msk [vmem:[%s2] sm:$0xff] %vm31, %v16
    %v33 = vand.u32 2147483647, %v30
    %vm34 = vcmp.le.f32.partialorder %v33, 0.7853982
    %vm35 = vcmp.lt.s32.totalorder %v30, 0
    %v36 = vand.u32 %v30, 2139095040
    %v37 = vshrl.u32 %v36, 23
    %v38 = vsub.s32 %v37, 127
    %v39 = vand.u32 2147483647, %v30
    %v40 = vand.u32 %v39, 8388607
    %v41 = vor.u32 %v40, 8388608
    %v42 = vsub.s32 0, %v41
    %v43 = vadd.s32 %v38, 1
    %vm44 = vcmp.gt.s32.totalorder %v43, 0
    %v45 = vsel %vm44, %v43, 0
    %v46 = vshrl.u32 %v45, 5
    %v47 = vand.u32 %v45, 31
    %v48 = vsub.s32 32, %v47
    %v49 = vshrl.u32 683565275, %v48
    %v50 = vshll.u32 683565275, %v47
    %v51 = vshrl.u32 2475754826, %v48
    %v52 = vor.u32 %v50, %v51
    %v53 = vshll.u32 2475754826, %v47
    %v54 = vshrl.u32 2131351028, %v48
    %v55 = vor.u32 %v53, %v54
    %v56 = vshll.u32 2131351028, %v47
    %v57 = vshrl.u32 2102212464, %v48
    %v58 = vor.u32 %v56, %v57
    %v59 = vshll.u32 2102212464, %v47
    %v60 = vshrl.u32 920167782, %v48
    %v61 = vor.u32 %v59, %v60
    %v62 = vshll.u32 920167782, %v47
    %v63 = vshrl.u32 1326507024, %v48
    %v64 = vor.u32 %v62, %v63
    %vm65 = vcmp.lt.s32.totalorder %v46, 1
    %vm66 = vcmp.lt.s32.totalorder %v46, 2
    %vm67 = vcmp.lt.s32.totalorder %v46, 3
    %vm68 = vcmp.lt.s32.totalorder %v46, 4
    %v69 = vsel %vm65, %v49, %v52
    %v70 = vsel %vm68, %v58, 2102212464
    %v71 = vsel %vm67, %v55, %v70
    %v72 = vsel %vm66, %v69, %v71
    %v73 = vsel %vm65, %v52, %v55
    %v74 = vsel %vm68, %v61, 920167782
    %v75 = vsel %vm67, %v58, %v74
    %v76 = vsel %vm66, %v73, %v75
    %v77 = vsel %vm65, %v55, %v58
    %v78 = vsel %vm68, %v64, 1326507024
    %v79 = vsel %vm67, %v61, %v78
    %v80 = vsel %vm66, %v77, %v79
    %v81 = vshll.u32 %v41, 8
    %v82 = vmul.u32.u64.compose %v81, %v80
    %v83 = vextract.low.u32 %v82
    %v84 = vextract.high.u32 %v82
    %v85 = vmul.u32.u64.compose %v81, %v76
    %v86 = vextract.low.u32 %v85
    %v87 = vextract.high.u32 %v85
    %v88 = vmul.u32 %v81, %v72
    %v89 = vadd.s32 %v84, %v86
    %vm90 = vc.u32 %v84, %v86
    %v91 = vadd.s32 %v87, 1
    %v92 = vsel %vm90, %v91, %v87
    %v93 = vadd.s32 %v88, %v92
    %v94 = vadd.s32 %v93, 536870912
    %v95 = vshrl.u32 %v94, 30
    %v96 = vshll.u32 %v95, 30
    %v97 = vsub.s32 %v93, %v96
    %vm98 = vcmp.lt.s32.totalorder %v97, 0
    %v99 = vsub.s32 0, %v97
    %v100 = vsel %vm98, %v99, %v97
    %v101 = vclz %v100
    %v102 = vsub.s32 %v101, 2
    %vm103 = vcmp.gt.s32.totalorder 0, %v102
    %v104 = vsel %vm103, 0, %v102
    %v105 = vsub.s32 32, %v104
    %v106 = vshll.u32 %v97, %v104
    %v107 = vshrl.u32 %v89, %v105
    %v108 = vor.u32 %v106, %v107
    %v109 = vsub.s32 4294967266, %v104
    %v110 = vadd.s32 %v109, 127
    %v111 = vshll.u32 %v110, 23
    %v112 = vor.u32 4788187, %v111
    %v113 = vand.u32 2147483647, %v112
    %v115 = vcvt.s32.f32 %v108
    %v116 = vmul.f32 %v115, %v113
    %v117 = vxor.u32 %v116, 2147483648
    %v118 = vsel %vm35, %v117, %v116
    %v119 = vsub.s32 4, %v95
    %v120 = vsel %vm35, %v119, %v95
    %v121 = vsel %vm34, %v30, %v118
    %v122 = vsel %vm34, 0, %v120
    %v123 = vcosq.f32.pop %v121
    %v124 = vsinq.f32.pop %v121
    %vm125 = vweird.f32 %v30
    %v126 = vadd.s32 %v122, 3
    %v127 = vand.u32 %v126, 3
    %vm128 = vcmp.lt.s32.totalorder %v127, 2
    %vm129 = vcmp.eq.s32.totalorder %v127, 0
    %v130 = vxor.u32 %v124, 2147483648
    %v131 = vsel %vm129, %v123, %v130
    %vm132 = vcmp.eq.s32.totalorder %v127, 2
    %v133 = vxor.u32 %v123, 2147483648
    %v134 = vsel %vm132, %v133, %v124
    %v135 = vsel %vm128, %v131, %v134
    %v136 = vsel %vm125, nan, %v135
    %vm137 = vcmask 64512
    %138 = vst.msk [vmem:[#allocation2] sm:$0xff] %vm137, %v136
    %v139 = vand.u32 2147483647, %v30
    %vm140 = vcmp.le.f32.partialorder %v139, 0.7853982
    %vm141 = vcmp.lt.s32.totalorder %v30, 0
    %v142 = vand.u32 %v30, 2139095040
    %v143 = vshrl.u32 %v142, 23
    %v144 = vsub.s32 %v143, 127
    %v145 = vand.u32 2147483647, %v30
    %v146 = vand.u32 %v145, 8388607
    %v147 = vor.u32 %v146, 8388608
    %v148 = vsub.s32 0, %v147
    %v149 = vadd.s32 %v144, 1
    %vm150 = vcmp.gt.s32.totalorder %v149, 0
    %v151 = vsel %vm150, %v149, 0
    %v152 = vshrl.u32 %v151, 5
    %v153 = vand.u32 %v151, 31
    %v154 = vsub.s32 32, %v153
    %v155 = vshrl.u32 683565275, %v154
    %v156 = vshll.u32 683565275, %v153
    %v157 = vshrl.u32 2475754826, %v154
    %v158 = vor.u32 %v156, %v157
    %v159 = vshll.u32 2475754826, %v153
    %v160 = vshrl.u32 2131351028, %v154
    %v161 = vor.u32 %v159, %v160
    %v162 = vshll.u32 2131351028, %v153
    %v163 = vshrl.u32 2102212464, %v154
    %v164 = vor.u32 %v162, %v163
    %v165 = vshll.u32 2102212464, %v153
    %v166 = vshrl.u32 920167782, %v154
    %v167 = vor.u32 %v165, %v166
    %v168 = vshll.u32 920167782, %v153
    %v169 = vshrl.u32 1326507024, %v154
    %v170 = vor.u32 %v168, %v169
    %vm171 = vcmp.lt.s32.totalorder %v152, 1
    %vm172 = vcmp.lt.s32.totalorder %v152, 2
    %vm173 = vcmp.lt.s32.totalorder %v152, 3
    %vm174 = vcmp.lt.s32.totalorder %v152, 4
    %v175 = vsel %vm171, %v155, %v158
    %v176 = vsel %vm174, %v164, 2102212464
    %v177 = vsel %vm173, %v161, %v176
    %v178 = vsel %vm172, %v175, %v177
    %v179 = vsel %vm171, %v158, %v161
    %v180 = vsel %vm174, %v167, 920167782
    %v181 = vsel %vm173, %v164, %v180
    %v182 = vsel %vm172, %v179, %v181
    %v183 = vsel %vm171, %v161, %v164
    %v184 = vsel %vm174, %v170, 1326507024
    %v185 = vsel %vm173, %v167, %v184
    %v186 = vsel %vm172, %v183, %v185
    %v187 = vshll.u32 %v147, 8
    %v188 = vmul.u32.u64.compose %v187, %v186
    %v189 = vextract.low.u32 %v188
    %v190 = vextract.high.u32 %v188
    %v191 = vmul.u32.u64.compose %v187, %v182
    %v192 = vextract.low.u32 %v191
    %v193 = vextract.high.u32 %v191
    %v194 = vmul.u32 %v187, %v178
    %v195 = vadd.s32 %v190, %v192
    %vm196 = vc.u32 %v190, %v192
    %v197 = vadd.s32 %v193, 1
    %v198 = vsel %vm196, %v197, %v193
    %v199 = vadd.s32 %v194, %v198
    %v200 = vadd.s32 %v199, 536870912
    %v201 = vshrl.u32 %v200, 30
    %v202 = vshll.u32 %v201, 30
    %v203 = vsub.s32 %v199, %v202
    %vm204 = vcmp.lt.s32.totalorder %v203, 0
    %v205 = vsub.s32 0, %v203
    %v206 = vsel %vm204, %v205, %v203
    %v207 = vclz %v206
    %v208 = vsub.s32 %v207, 2
    %vm209 = vcmp.gt.s32.totalorder 0, %v208
    %v210 = vsel %vm209, 0, %v208
    %v211 = vsub.s32 32, %v210
    %v212 = vshll.u32 %v203, %v210
    %v213 = vshrl.u32 %v195, %v211
    %v214 = vor.u32 %v212, %v213
    %v215 = vsub.s32 4294967266, %v210
    %v216 = vadd.s32 %v215, 127
    %v217 = vshll.u32 %v216, 23
    %v218 = vor.u32 4788187, %v217
    %v219 = vand.u32 2147483647, %v218
    %v221 = vcvt.s32.f32 %v214
    %v222 = vmul.f32 %v221, %v219
    %v223 = vxor.u32 %v222, 2147483648
    %v224 = vsel %vm141, %v223, %v222
    %v225 = vsub.s32 4, %v201
    %v226 = vsel %vm141, %v225, %v201
    %v227 = vsel %vm140, %v30, %v224
    %v228 = vsel %vm140, 0, %v226
    %v229 = vcosq.f32.pop %v227
    %v230 = vsinq.f32.pop %v227
    %vm231 = vweird.f32 %v30
    %v232 = vand.u32 %v228, 3
    %vm233 = vcmp.lt.s32.totalorder %v232, 2
    %vm234 = vcmp.eq.s32.totalorder %v232, 0
    %v235 = vxor.u32 %v230, 2147483648
    %v236 = vsel %vm234, %v229, %v235
    %vm237 = vcmp.eq.s32.totalorder %v232, 2
    %v238 = vxor.u32 %v229, 2147483648
    %v239 = vsel %vm237, %v238, %v230
    %v240 = vsel %vm233, %v236, %v239
    %v241 = vsel %vm231, nan, %v240
    %242 = vst.msk [vmem:[#allocation4] sm:$0xff] %vm137, %v241
    // Predicated region
    $region10: #{tpu_custom_call.1} parent=1 // pred_check
      _
    $region11: #{tpu_custom_call.1} parent=1 // pred_check_branch
      %244 = sbr.rel (0) target = $region13
    $region12: #{tpu_custom_call.1} parent=1 // pred_region
      _
    $region13: #{tpu_custom_call.1} parent=1 // pred_fallthru
      _
    // Predicated region
    $region14: #{tpu_custom_call.1} parent=1 // pred_check
      _
    $region15: #{tpu_custom_call.1} parent=1 // pred_check_branch
      %246 = sbr.rel (0) target = $region17
    $region16: #{tpu_custom_call.1} parent=1 // pred_region
      %s248 = ssub.s32 128, 128
      %249 = vsyncadd [#allocation3], %s248
      %s251 = sshll.u32 [#allocation2], 4
      %s252 = int_to_ptr.vmem [resolvable:$true] %s251
      %254 = dma.vmem_to_hbm [thread:$0]  %s252, 128, %s3, [#allocation3]
    $region17: #{tpu_custom_call.1} parent=1 // pred_fallthru
      _
    // Predicated region
    $region18: #{tpu_custom_call.1} parent=1 // pred_check
      _
    $region19: #{tpu_custom_call.1} parent=1 // pred_check_branch
      %256 = sbr.rel (0) target = $region21
    $region20: #{tpu_custom_call.1} parent=1 // pred_region
      %s258 = ssub.s32 128, 128
      %259 = vsyncadd [#allocation5], %s258
      %s261 = sshll.u32 [#allocation4], 4
      %s262 = int_to_ptr.vmem [resolvable:$true] %s261
      %264 = dma.vmem_to_hbm [thread:$0]  %s262, 128, %s4, [#allocation5]
    $region21: #{tpu_custom_call.1} parent=1 // pred_fallthru
      _
    // Predicated region
    $region22: #{tpu_custom_call.1} parent=1 // pred_check
      _
    $region23: #{tpu_custom_call.1} parent=1 // pred_check_branch
      %266 = sbr.rel (0) target = $region25
    $region24: #{tpu_custom_call.1} parent=1 // pred_region
      _
    $region25: #{tpu_custom_call.1} parent=1 // pred_fallthru
      _
    // Predicated region
    $region26: #{tpu_custom_call.1} parent=1 // pred_check
      _
    $region27: #{tpu_custom_call.1} parent=1 // pred_check_branch
      %268 = sbr.rel (0) target = $region29
    $region28: #{tpu_custom_call.1} parent=1 // pred_region
      %269 = dma.done [#allocation3], 128
    $region29: #{tpu_custom_call.1} parent=1 // pred_fallthru
      _
    // Predicated region
    $region30: #{tpu_custom_call.1} parent=1 // pred_check
      _
    $region31: #{tpu_custom_call.1} parent=1 // pred_check_branch
      %271 = sbr.rel (0) target = $region33
    $region32: #{tpu_custom_call.1} parent=1 // pred_region
      %272 = dma.done [#allocation5], 128
    $region33: #{tpu_custom_call.1} parent=1 // pred_fallthru
      _
    %273 = vsyncpa [#allocation3], 1
    %274 = vsyncpa [#allocation5], 1

</llo_original>
